<compile_context>
chip_gen: v5e
topology: v5e:2x2
jax: 0.10.0
libtpu: 0.0.40
codegen_flags: <defaults>
</compile_context>

<pallas_src>
import functools

import jax
import jax.numpy as jnp
import numpy as np
from jax.experimental import pallas as pl
from jax.experimental.pallas import tpu as pltpu

_NEG = -1e30  # "minus infinity" for masking invalid time rows / padded columns


def _round_up(x, m):
    return (x + m - 1) // m * m


def _cnn_encoder_kernel(batch_tile, t_pad,
                        x2_ref, w_ref, bm_ref, fcw_ref, fcb_ref, out_ref):
    """x2_ref : (bt*T_pad, fs_max*E)   im2col slab (batch-stacked)
       w_ref  : (fs_max*E, F_pad)      branch-fused, zero-padded conv weights
       bm_ref : (T_pad, F_pad)         conv bias where window valid, -1e30 else
       fcw_ref: (F_pad, O_pad)         padded fc weight
       fcb_ref: (1, O_pad)             padded fc bias
       out_ref: (bt, O_pad)            lane-dense padded output slab
    """
    # One MXU matmul for every (batch, time, filter-size, filter) combination.
    scores = jnp.dot(x2_ref[...], w_ref[...],
                     preferred_element_type=jnp.float32)        # (bt*T_pad, F_pad)

    # Add conv bias / validity mask per (time-row, branch-column).
    scores = scores.reshape(batch_tile, t_pad, -1) + bm_ref[...]  # (bt,T_pad,F_pad)

    # Max-pool over time, then ReLU (relu(max(x)) == max(relu(x)), monotone;
    # invalid rows sit at -1e30 so they never win the max).
    pooled = jnp.maximum(jnp.max(scores, axis=1), 0.0)          # (bt, F_pad)

    # concat + Linear folded into one matmul; single lane-dense store.
    out_ref[...] = (jnp.dot(pooled, fcw_ref[...],
                            preferred_element_type=jnp.float32)
                    + fcb_ref[...]).astype(out_ref.dtype)


def cnn_encoder_forward(rdv, conv_ws, conv_bs, fc_w, fc_b, *,
                        filter_sizes, num_filters, batch_tile=None):
    """rdv: (B, S, E) f32 -> (B, output_dim) f32 (matches CNNEncoder.forward)."""
    B, S, E = rdv.shape
    out_dim = fc_w.shape[-1]
    nb = len(filter_sizes)
    fs_max, fs_min = max(filter_sizes), min(filter_sizes)
    assert S >= fs_max, "sequence shorter than largest filter size"

    T = S - fs_min + 1                      # max #valid windows over branches
    T_pad = _round_up(T, 8)                 # sublane-aligned time rows
    K = fs_max * E                          # im2col contraction width
    F = nb * num_filters
    F_pad = _round_up(max(F, 128), 128)     # lane-dense filter columns
    O_pad = _round_up(max(out_dim, 128), 128)  # lane-dense output columns
    f32 = jnp.float32

    # ---- layout plumbing (wrapper / XLA side) -------------------------------
    # im2col: zero-pad the sequence so every tap index is in-bounds, then build
    # a (B*T_pad, fs_max*E) slab; taps past the window are multiplied by zero
    # weights, padded rows are masked to -1e30 below.
    S_pad = T_pad + fs_max - 1
    x_p = jnp.pad(rdv.astype(f32), ((0, 0), (0, S_pad - S), (0, 0)))
    x2 = jnp.concatenate([x_p[:, i:i + T_pad, :] for i in range(fs_max)],
                         axis=-1)                                # (B, T_pad, K)
    x2 = x2.reshape(B * T_pad, K)

    # Branch-fused conv weight: (fs, E, nf) -> (fs*E, nf), zero-pad taps to
    # fs_max, concat branches along columns, zero-pad columns to F_pad.
    w_cols = []
    for fs, wk in zip(filter_sizes, conv_ws):
        wk2 = wk.astype(f32).reshape(fs * E, num_filters)
        w_cols.append(jnp.pad(wk2, ((0, K - fs * E), (0, 0))))
    w_fused = jnp.pad(jnp.concatenate(w_cols, axis=1),
                      ((0, 0), (0, F_pad - F)))                  # (K, F_pad)

    # Fused (bias + validity-mask) additive term, shape (T_pad, F_pad):
    # conv bias where the sliding window is valid, -1e30 otherwise.
    t_idx = jnp.arange(T_pad, dtype=jnp.int32)[:, None]          # (T_pad, 1)
    bm_cols = []
    for fs, bk in zip(filter_sizes, conv_bs):
        valid = t_idx <= (S - fs)                                # (T_pad, 1)
        bias_row = bk.astype(f32).reshape(1, num_filters)
        bm_cols.append(jnp.where(valid, bias_row, f32(_NEG)))    # (T_pad, nf)
    bias_mask = jnp.pad(jnp.concatenate(bm_cols, axis=1),
                        ((0, 0), (0, F_pad - F)), constant_values=_NEG)

    # Padded fc weight / bias (zeros in padded rows/cols -> exact result).
    fcw_p = jnp.zeros((F_pad, O_pad), f32).at[:F, :out_dim].set(fc_w.astype(f32))
    fcb_p = jnp.zeros((1, O_pad), f32).at[0, :out_dim].set(
        fc_b.astype(f32).reshape(-1))

    # ---- pallas_call --------------------------------------------------------
    bt = B if batch_tile is None else batch_tile
    assert B % bt == 0, "batch_tile must divide batch"
    grid = (B // bt,)

    out_p = pl.pallas_call(
        functools.partial(_cnn_encoder_kernel, bt, T_pad),
        out_shape=jax.ShapeDtypeStruct((B, O_pad), f32),
        grid=grid,
        in_specs=[
            pl.BlockSpec((bt * T_pad, K), lambda i: (i, 0)),   # im2col rows
            pl.BlockSpec((K, F_pad), lambda i: (0, 0)),        # fused conv w
            pl.BlockSpec((T_pad, F_pad), lambda i: (0, 0)),    # bias + mask
            pl.BlockSpec((F_pad, O_pad), lambda i: (0, 0)),    # fc weight
            pl.BlockSpec((1, O_pad), lambda i: (0, 0)),        # fc bias
        ],
        out_specs=pl.BlockSpec((bt, O_pad), lambda i: (i, 0)),
        compiler_params=pltpu.CompilerParams(
            dimension_semantics=("parallel",)),                # 2nd TC on v7x
    )(x2, w_fused, bias_mask, fcw_p, fcb_p)

    return out_p[:, :out_dim]


def ref_forward_np(rdv, conv_ws, conv_bs, fc_w, fc_b):
    """Pure numpy (float64) reference mirroring the PyTorch forward (eval)."""
    x = np.asarray(rdv, dtype=np.float64)
    B, S, E = x.shape
    feats = []
    for w, b in zip(conv_ws, conv_bs):
        w = np.asarray(w, np.float64)
        b = np.asarray(b, np.float64)
        fs, _, nf = w.shape
        T = S - fs + 1
        s = np.zeros((B, T, nf), np.float64)
        for i in range(fs):
            s += np.einsum('bte,ef->btf', x[:, i:i + T, :], w[i])
        s = np.maximum(s + b.reshape(1, 1, nf), 0.0)
        feats.append(s.max(axis=1))
    feat = np.concatenate(feats, axis=1)
    return feat @ np.asarray(fc_w, np.float64) + np.asarray(fc_b, np.float64)


if __name__ == "__main__":
    # Small shapes consistent with the module.
    B, S = 2, 8                       # batch, #sentence
    hidden_size = 32                  # embedding dim E
    num_filters = 16
    filter_sizes = (2, 3, 4)
    output_dim = 2
    f_total = len(filter_sizes) * num_filters

    key = jax.random.PRNGKey(0)
    keys = jax.random.split(key, 3 + 2 * len(filter_sizes))

    rdv = jax.random.normal(keys[0], (B, S, hidden_size), dtype=jnp.float32)

    # Conv2d(1, nf, (fs, E)) params, stored as (fs, E, nf) / (1, nf).
    conv_ws, conv_bs = [], []
    for i, fs in enumerate(filter_sizes):
        conv_ws.append(0.1 * jax.random.normal(
            keys[1 + 2 * i], (fs, hidden_size, num_filters), dtype=jnp.float32))
        conv_bs.append(0.05 * jax.random.normal(
            keys[2 + 2 * i], (1, num_filters), dtype=jnp.float32))

    # Linear(f_total, output_dim): xavier_normal weight, stored transposed as
    # (f_total, output_dim); bias (1, output_dim).
    xavier_std = (2.0 / (f_total + output_dim)) ** 0.5
    fc_w = xavier_std * jax.random.normal(
        keys[-2], (f_total, output_dim), dtype=jnp.float32)
    fc_b = 0.05 * jax.random.normal(keys[-1], (1, output_dim), dtype=jnp.float32)

    out = cnn_encoder_forward(rdv, conv_ws, conv_bs, fc_w, fc_b,
                              filter_sizes=filter_sizes,
                              num_filters=num_filters)
    out = jax.block_until_ready(out)

    expected = ref_forward_np(rdv, conv_ws, conv_bs, fc_w, fc_b)
    assert out.shape == (B, output_dim)
    np.testing.assert_allclose(np.asarray(out, np.float64), expected,
                               rtol=1e-4, atol=1e-4)
    print("KERNEL_OK")
</pallas_src>

<mosaic_0001>
module attributes {stable_mosaic.version = 11 : i64} {
  func.func @_cnn_encoder_kernel(%arg0: i32, %arg1: memref<16x128xf32, #tpu.memory_space<vmem>>, %arg2: memref<128x128xf32, #tpu.memory_space<vmem>>, %arg3: memref<8x128xf32, #tpu.memory_space<vmem>>, %arg4: memref<128x128xf32, #tpu.memory_space<vmem>>, %arg5: memref<1x128xf32, #tpu.memory_space<vmem>>, %arg6: memref<2x128xf32, #tpu.memory_space<vmem>>) attributes {dimension_semantics = [#tpu.dimension_semantics<parallel>], iteration_bounds = array<i64: 1>, scalar_prefetch = 0 : i64, scratch_operands = 0 : i64, tpu.core_type = #tpu.core_type<tc>, window_params = [{transform_indices = @transform_0, window_bounds = array<i64: 16, 128>}, {pipeline_mode = #tpu.pipeline_mode<synchronous>, transform_indices = @transform_1, window_bounds = array<i64: 128, 128>}, {pipeline_mode = #tpu.pipeline_mode<synchronous>, transform_indices = @transform_2, window_bounds = array<i64: 8, 128>}, {pipeline_mode = #tpu.pipeline_mode<synchronous>, transform_indices = @transform_3, window_bounds = array<i64: 128, 128>}, {pipeline_mode = #tpu.pipeline_mode<synchronous>, transform_indices = @transform_4, window_bounds = array<i64: 1, 128>}, {transform_indices = @transform_5, window_bounds = array<i64: 2, 128>}]} {
    %c0 = arith.constant 0 : index
    %c0_0 = arith.constant 0 : index
    %0 = vector.load %arg1[%c0, %c0_0] : memref<16x128xf32, #tpu.memory_space<vmem>>, vector<16x128xf32>
    %c0_1 = arith.constant 0 : index
    %c0_2 = arith.constant 0 : index
    %1 = vector.load %arg2[%c0_1, %c0_2] : memref<128x128xf32, #tpu.memory_space<vmem>>, vector<128x128xf32>
    %cst = arith.constant dense<0.000000e+00> : vector<16x128xf32>
    %2 = tpu.matmul %0, %1, %cst {dimension_numbers = #tpu.dot_dimension_numbers<[1], [0], [0], [1], [0, 0, 1, 1], [], []>} : vector<16x128xf32>, vector<128x128xf32>, vector<16x128xf32> -> vector<16x128xf32>
    %3 = vector.shape_cast %2 : vector<16x128xf32> to vector<2x8x128xf32>
    %c0_3 = arith.constant 0 : index
    %c0_4 = arith.constant 0 : index
    %4 = vector.load %arg3[%c0_3, %c0_4] : memref<8x128xf32, #tpu.memory_space<vmem>>, vector<8x128xf32>
    %5 = vector.shape_cast %4 : vector<8x128xf32> to vector<1x8x128xf32>
    %6 = vector.broadcast %5 : vector<1x8x128xf32> to vector<2x8x128xf32>
    %7 = arith.addf %3, %6 : vector<2x8x128xf32>
    %cst_5 = arith.constant dense<0xFF800000> : vector<2x128xf32>
    %8 = vector.multi_reduction <maximumf>, %7, %cst_5 [1] : vector<2x8x128xf32> to vector<2x128xf32>
    %cst_6 = arith.constant 0.000000e+00 : f32
    %9 = vector.broadcast %cst_6 : f32 to vector<2x128xf32>
    %10 = arith.maximumf %8, %9 : vector<2x128xf32>
    %c0_7 = arith.constant 0 : index
    %c0_8 = arith.constant 0 : index
    %11 = vector.load %arg4[%c0_7, %c0_8] : memref<128x128xf32, #tpu.memory_space<vmem>>, vector<128x128xf32>
    %cst_9 = arith.constant dense<0.000000e+00> : vector<2x128xf32>
    %12 = tpu.matmul %10, %11, %cst_9 {dimension_numbers = #tpu.dot_dimension_numbers<[1], [0], [0], [1], [0, 0, 1, 1], [], []>} : vector<2x128xf32>, vector<128x128xf32>, vector<2x128xf32> -> vector<2x128xf32>
    %c0_10 = arith.constant 0 : index
    %c0_11 = arith.constant 0 : index
    %13 = vector.load %arg5[%c0_10, %c0_11] : memref<1x128xf32, #tpu.memory_space<vmem>>, vector<1x128xf32>
    %14 = vector.broadcast %13 : vector<1x128xf32> to vector<2x128xf32>
    %15 = arith.addf %12, %14 : vector<2x128xf32>
    %c0_12 = arith.constant 0 : index
    %c0_13 = arith.constant 0 : index
    %16 = vector.load %arg6[%c0_12, %c0_13] : memref<2x128xf32, #tpu.memory_space<vmem>>, vector<2x128xf32>
    tpu.vector_store %arg6[%c0_12, %c0_13], %15 {strides = array<i32>} : memref<2x128xf32, #tpu.memory_space<vmem>>, vector<2x128xf32>,
    return
  }
  func.func @transform_0(%arg0: i32) -> (i32, i32) {
    %c0_i32 = arith.constant 0 : i32
    %c0_i32_0 = arith.constant 0 : i32
    return %arg0, %c0_i32 : i32, i32
  }
  func.func @transform_1(%arg0: i32) -> (i32, i32) {
    %c0_i32 = arith.constant 0 : i32
    %c0_i32_0 = arith.constant 0 : i32
    %c0_i32_1 = arith.constant 0 : i32
    return %c0_i32, %c0_i32_0 : i32, i32
  }
  func.func @transform_2(%arg0: i32) -> (i32, i32) {
    %c0_i32 = arith.constant 0 : i32
    %c0_i32_0 = arith.constant 0 : i32
    %c0_i32_1 = arith.constant 0 : i32
    return %c0_i32, %c0_i32_0 : i32, i32
  }
  func.func @transform_3(%arg0: i32) -> (i32, i32) {
    %c0_i32 = arith.constant 0 : i32
    %c0_i32_0 = arith.constant 0 : i32
    %c0_i32_1 = arith.constant 0 : i32
    return %c0_i32, %c0_i32_0 : i32, i32
  }
  func.func @transform_4(%arg0: i32) -> (i32, i32) {
    %c0_i32 = arith.constant 0 : i32
    %c0_i32_0 = arith.constant 0 : i32
    %c0_i32_1 = arith.constant 0 : i32
    return %c0_i32, %c0_i32_0 : i32, i32
  }
  func.func @transform_5(%arg0: i32) -> (i32, i32) {
    %c0_i32 = arith.constant 0 : i32
    %c0_i32_0 = arith.constant 0 : i32
    return %arg0, %c0_i32 : i32, i32
  }
}

</mosaic_0001>

<llo_original>
// kernel: tpu_custom_call.1
$region0: #{tpu_custom_call.1}
  #allocation0 [shape = 'u32[]', space=smem, size = 0x4, offset = 0x4, fixed_abs, tag = 'smem constant byte address 0x4 - core index']
  #allocation1 [shape = 'u32[72,128]{1,0:T(1,128)}', space=vmem, size = 0x9000, scoped, tag = 'internal scratch']
  %s0 = inlined_call_operand.hbm [shape: f32[16,128], index: 0, kind: input, shape index: {}]
  %s1 = inlined_call_operand.hbm [shape: f32[128,128], index: 1, kind: input, shape index: {}]
  %s2 = inlined_call_operand.hbm [shape: f32[8,128], index: 2, kind: input, shape index: {}]
  %s3 = inlined_call_operand.hbm [shape: f32[128,128], index: 3, kind: input, shape index: {}]
  %s4 = inlined_call_operand.vmem [shape: f32[1,128], index: 4, kind: input, shape index: {}]
  %s5 = inlined_call_operand.hbm [shape: f32[2,128], index: 5, kind: output, shape index: {}]
  %s6 = sld [smem:[#allocation0]]
  $region46: #{tpu_custom_call.1} parent=0
    _
  %s8 = ssub.s32 1, %s6
  %s9 = scalar_select 0, %s8, %s6
  $region1: #{tpu_custom_call.1} parent=0
    #allocation2 [shape = 'u8[8192]{0}', space=vmem, size = 0x2000, scoped, tag = 'input window, operand 0, single buffered']
    #allocation3 [shape = 's32[1]{0}', space=sflag, size = 0x4, scoped, tag = 'scoped memory for tpu_custom_call.1']
    #allocation4 [shape = 's32[1]{0}', space=sflag, size = 0x4, scoped, tag = 'scoped memory for tpu_custom_call.1']
    #allocation5 [shape = 'u8[65536]{0}', space=vmem, size = 0x10000, scoped, tag = 'input window, operand 1, single buffered']
    #allocation6 [shape = 's32[1]{0}', space=sflag, size = 0x4, scoped, tag = 'scoped memory for tpu_custom_call.1']
    #allocation7 [shape = 'u8[4096]{0}', space=vmem, size = 0x1000, scoped, tag = 'input window, operand 2, single buffered']
    #allocation8 [shape = 'u8[65536]{0}', space=vmem, size = 0x10000, scoped, tag = 'input window, operand 3, single buffered']
    #allocation9 [shape = 's32[1]{0}', space=sflag, size = 0x4, scoped, tag = 'scoped memory for tpu_custom_call.1']
    #allocation10 [shape = 'u8[1024]{0}', space=vmem, size = 0x400, scoped, tag = 'output window, operand 0, single buffered']
    %10 = vsyncpa [#allocation3], 0
    %11 = vsyncpa [#allocation6], 0
    %12 = vsyncpa [#allocation9], 0
    %13 = vsyncpa [#allocation4], 0
    // Predicated region
    $region2: #{tpu_custom_call.1} parent=1 // pred_check
      _
    $region3: #{tpu_custom_call.1} parent=1 // pred_check_branch
      %15 = sbr.rel (0) target = $region5
    $region4: #{tpu_custom_call.1} parent=1 // pred_region
      %17 = vsyncadd [#allocation3], 0
      %s18 = sshll.u32 %s0, 4
      %s19 = int_to_ptr.hbm [resolvable:$true] %s18
      %s20 = sshll.u32 [#allocation2], 4
      %s21 = int_to_ptr.vmem [resolvable:$true] %s20
      %26 = dma.hbm_to_vmem [thread:$0]  %s19, 256, %s21, [#allocation3], 128, 128, 8
    $region5: #{tpu_custom_call.1} parent=1 // pred_fallthru
      _
    // Predicated region
    $region6: #{tpu_custom_call.1} parent=1 // pred_check
      _
    $region7: #{tpu_custom_call.1} parent=1 // pred_check_branch
      %28 = sbr.rel (0) target = $region9
    $region8: #{tpu_custom_call.1} parent=1 // pred_region
      %30 = vsyncadd [#allocation6], 0
      %s31 = sshll.u32 %s1, 4
      %s32 = int_to_ptr.hbm [resolvable:$true] %s31
      %s33 = sshll.u32 [#allocation5], 4
      %s34 = int_to_ptr.vmem [resolvable:$true] %s33
      %39 = dma.hbm_to_vmem [thread:$0]  %s32, 2048, %s34, [#allocation6], 128, 128, 8
    $region9: #{tpu_custom_call.1} parent=1 // pred_fallthru
      _
    // Predicated region
    $region10: #{tpu_custom_call.1} parent=1 // pred_check
      _
    $region11: #{tpu_custom_call.1} parent=1 // pred_check_branch
      %41 = sbr.rel (0) target = $region13
    $region12: #{tpu_custom_call.1} parent=1 // pred_region
      %43 = vsyncadd [#allocation6], 0
      %s45 = sshll.u32 %s2, 4
      %s46 = int_to_ptr.hbm [resolvable:$true] %s45
      %s47 = sshll.u32 [#allocation7], 4
      %s48 = int_to_ptr.vmem [resolvable:$true] %s47
      %50 = dma.hbm_to_vmem [thread:$0]  %s46, 128, %s48, [#allocation6]
    $region13: #{tpu_custom_call.1} parent=1 // pred_fallthru
      _
    // Predicated region
    $region14: #{tpu_custom_call.1} parent=1 // pred_check
      _
    $region15: #{tpu_custom_call.1} parent=1 // pred_check_branch
      %52 = sbr.rel (0) target = $region17
    $region16: #{tpu_custom_call.1} parent=1 // pred_region
      %54 = vsyncadd [#allocation9], 0
      %s55 = sshll.u32 %s3, 4
      %s56 = int_to_ptr.hbm [resolvable:$true] %s55
      %s57 = sshll.u32 [#allocation8], 4
      %s58 = int_to_ptr.vmem [resolvable:$true] %s57
      %63 = dma.hbm_to_vmem [thread:$0]  %s56, 2048, %s58, [#allocation9], 128, 128, 8
    $region17: #{tpu_custom_call.1} parent=1 // pred_fallthru
      _
    // Predicated region
    $region18: #{tpu_custom_call.1} parent=1 // pred_check
      _
    $region19: #{tpu_custom_call.1} parent=1 // pred_check_branch
      %65 = sbr.rel (0) target = $region21
    $region20: #{tpu_custom_call.1} parent=1 // pred_region
      _
    $region21: #{tpu_custom_call.1} parent=1 // pred_fallthru
      _
    // Predicated region
    $region22: #{tpu_custom_call.1} parent=1 // pred_check
      _
    $region23: #{tpu_custom_call.1} parent=1 // pred_check_branch
      %67 = sbr.rel (0) target = $region25
    $region24: #{tpu_custom_call.1} parent=1 // pred_region
      %69 = dma.done [#allocation3], 256
    $region25: #{tpu_custom_call.1} parent=1 // pred_fallthru
      _
    // Predicated region
    $region26: #{tpu_custom_call.1} parent=1 // pred_check
      _
    $region27: #{tpu_custom_call.1} parent=1 // pred_check_branch
      %71 = sbr.rel (0) target = $region29
    $region28: #{tpu_custom_call.1} parent=1 // pred_region
      %73 = dma.done [#allocation6], 2048
    $region29: #{tpu_custom_call.1} parent=1 // pred_fallthru
      _
    // Predicated region
    $region30: #{tpu_custom_call.1} parent=1 // pred_check
      _
    $region31: #{tpu_custom_call.1} parent=1 // pred_check_branch
      %75 = sbr.rel (0) target = $region33
    $region32: #{tpu_custom_call.1} parent=1 // pred_region
      %77 = dma.done [#allocation6], 128
    $region33: #{tpu_custom_call.1} parent=1 // pred_fallthru
      _
    // Predicated region
    $region34: #{tpu_custom_call.1} parent=1 // pred_check
      _
    $region35: #{tpu_custom_call.1} parent=1 // pred_check_branch
      %79 = sbr.rel (0) target = $region37
    $region36: #{tpu_custom_call.1} parent=1 // pred_region
      %81 = dma.done [#allocation9], 2048
    $region37: #{tpu_custom_call.1} parent=1 // pred_fallthru
      _
    %v82 = vld [vmem:[#allocation2] sm:$0xff]
    %v83 = vld [vmem:[#allocation2 + $0x8] sm:$0xff]
    %v84 = vld [vmem:[#allocation5] sm:$0xff]
    %v85 = vld [vmem:[#allocation5 + $0x8] sm:$0xff]
    %v86 = vld [vmem:[#allocation5 + $0x10] sm:$0xff]
    %v87 = vld [vmem:[#allocation5 + $0x18] sm:$0xff]
    %v88 = vld [vmem:[#allocation5 + $0x20] sm:$0xff]
    %v89 = vld [vmem:[#allocation5 + $0x28] sm:$0xff]
    %v90 = vld [vmem:[#allocation5 + $0x30] sm:$0xff]
    %v91 = vld [vmem:[#allocation5 + $0x38] sm:$0xff]
    %v92 = vld [vmem:[#allocation5 + $0x40] sm:$0xff]
    %v93 = vld [vmem:[#allocation5 + $0x48] sm:$0xff]
    %v94 = vld [vmem:[#allocation5 + $0x50] sm:$0xff]
    %v95 = vld [vmem:[#allocation5 + $0x58] sm:$0xff]
    %v96 = vld [vmem:[#allocation5 + $0x60] sm:$0xff]
    %v97 = vld [vmem:[#allocation5 + $0x68] sm:$0xff]
    %v98 = vld [vmem:[#allocation5 + $0x70] sm:$0xff]
    %v99 = vld [vmem:[#allocation5 + $0x78] sm:$0xff]
    %100 = vmatpush.msra.mxu0 %v99
    %101 = vmatpush.msra.mxu0 %v98
    %102 = vmatpush.msra.mxu0 %v97
    %103 = vmatpush.msra.mxu0 %v96
    %104 = vmatpush.msra.mxu0 %v95
    %105 = vmatpush.msra.mxu0 %v94
    %106 = vmatpush.msra.mxu0 %v93
    %107 = vmatpush.msra.mxu0 %v92
    %108 = vmatpush.msra.mxu0 %v91
    %109 = vmatpush.msra.mxu0 %v90
    %110 = vmatpush.msra.mxu0 %v89
    %111 = vmatpush.msra.mxu0 %v88
    %112 = vmatpush.msra.mxu0 %v87
    %113 = vmatpush.msra.mxu0 %v86
    %114 = vmatpush.msra.mxu0 %v85
    %115 = vmatpush.msra.mxu0 %v84
    %116 = vmatmul.f32.gmra.mxu0 %v82
    %v117 = vpop.f32.mrf.mxu0
    %v118 = vadd.f32 0.0, %v117
    %119 = vmatmul.f32.gmra.mxu0 %v83
    %v120 = vpop.f32.mrf.mxu0
    %v121 = vadd.f32 0.0, %v120
    %122 = vdwg.mxu0
    %v123 = vld [vmem:[#allocation7] sm:$0xff]
    %v124 = vadd.f32 %v118, %v123
    %v125 = vadd.f32 %v121, %v123
    %v126 = vrot.slane %v124, 4
    %v127 = vmax.f32 %v124, %v126
    %v128 = vrot.slane %v127, 2
    %v129 = vmax.f32 %v127, %v128
    %v130 = vrot.slane %v129, 1
    %v131 = vmax.f32 %v129, %v130
    %v132 = vrot.slane %v125, 4
    %v133 = vmax.f32 %v125, %v132
    %v134 = vrot.slane %v133, 2
    %v135 = vmax.f32 %v133, %v134
    %v136 = vrot.slane %v135, 1
    %v137 = vmax.f32 %v135, %v136
    %v138 = vmax.f32 %v131, 0.0
    %v139 = vmax.f32 %v137, 0.0
    %v140 = vld [vmem:[#allocation8] sm:$0xff]
    %v141 = vld [vmem:[#allocation8 + $0x8] sm:$0xff]
    %v142 = vld [vmem:[#allocation8 + $0x10] sm:$0xff]
    %v143 = vld [vmem:[#allocation8 + $0x18] sm:$0xff]
    %v144 = vld [vmem:[#allocation8 + $0x20] sm:$0xff]
    %v145 = vld [vmem:[#allocation8 + $0x28] sm:$0xff]
    %v146 = vld [vmem:[#allocation8 + $0x30] sm:$0xff]
    %v147 = vld [vmem:[#allocation8 + $0x38] sm:$0xff]
    %v148 = vld [vmem:[#allocation8 + $0x40] sm:$0xff]
    %v149 = vld [vmem:[#allocation8 + $0x48] sm:$0xff]
    %v150 = vld [vmem:[#allocation8 + $0x50] sm:$0xff]
    %v151 = vld [vmem:[#allocation8 + $0x58] sm:$0xff]
    %v152 = vld [vmem:[#allocation8 + $0x60] sm:$0xff]
    %v153 = vld [vmem:[#allocation8 + $0x68] sm:$0xff]
    %v154 = vld [vmem:[#allocation8 + $0x70] sm:$0xff]
    %v155 = vld [vmem:[#allocation8 + $0x78] sm:$0xff]
    %v156 = vld [vmem:[%s4] sm:$0x1]
    %v158 = vperm.slane %v156, 0
    %vm162 = vcmask 1041409
    %v163 = vsel %vm162, %v139, %v138
    %165 = vmatpush.msra.mxu0 %v155
    %166 = vmatpush.msra.mxu0 %v154
    %167 = vmatpush.msra.mxu0 %v153
    %168 = vmatpush.msra.mxu0 %v152
    %169 = vmatpush.msra.mxu0 %v151
    %170 = vmatpush.msra.mxu0 %v150
    %171 = vmatpush.msra.mxu0 %v149
    %172 = vmatpush.msra.mxu0 %v148
    %173 = vmatpush.msra.mxu0 %v147
    %174 = vmatpush.msra.mxu0 %v146
    %175 = vmatpush.msra.mxu0 %v145
    %176 = vmatpush.msra.mxu0 %v144
    %177 = vmatpush.msra.mxu0 %v143
    %178 = vmatpush.msra.mxu0 %v142
    %179 = vmatpush.msra.mxu0 %v141
    %180 = vmatpush.msra.mxu0 %v140
    %181 = vmatmul.f32.gmra.mxu0 %v163
    %v182 = vpop.f32.mrf.mxu0
    %v183 = vadd.f32 %v158, %v182
    %184 = vdwg.mxu0
    %185 = vst [vmem:[#allocation10] sm:$0x3] %v183
    // Predicated region
    $region38: #{tpu_custom_call.1} parent=1 // pred_check
      _
    $region39: #{tpu_custom_call.1} parent=1 // pred_check_branch
      %187 = sbr.rel (0) target = $region41
    $region40: #{tpu_custom_call.1} parent=1 // pred_region
      %189 = vsyncadd [#allocation4], 0
      %s191 = sshll.u32 [#allocation10], 4
      %s192 = int_to_ptr.vmem [resolvable:$true] %s191
      %s193 = sshll.u32 %s5, 4
      %s194 = int_to_ptr.hbm [resolvable:$true] %s193
      %196 = dma.vmem_to_hbm [thread:$0]  %s192, 32, %s194, [#allocation4]
    $region41: #{tpu_custom_call.1} parent=1 // pred_fallthru
      _
    // Predicated region
    $region42: #{tpu_custom_call.1} parent=1 // pred_check
      _
    $region43: #{tpu_custom_call.1} parent=1 // pred_check_branch
      %198 = sbr.rel (0) target = $region45
    $region44: #{tpu_custom_call.1} parent=1 // pred_region
      %200 = dma.done [#allocation4], 32
    $region45: #{tpu_custom_call.1} parent=1 // pred_fallthru
      _
    %201 = vsyncpa [#allocation3], 1
    %202 = vsyncpa [#allocation6], 1
    %203 = vsyncpa [#allocation9], 1
    %204 = vsyncpa [#allocation4], 1

</llo_original>
